<compile_context>
chip_gen: v7x
topology: tpu7x:2x2x1
jax: 0.10.0
libtpu: 0.0.40
codegen_flags: <defaults>
</compile_context>

<pallas_src>
import functools

import jax
import jax.numpy as jnp
from jax import lax
from jax.experimental import pallas as pl
from jax.experimental.pallas import tpu as pltpu


def _round_up(n, m):
    return ((n + m - 1) // m) * m


def _decoder_kernel(x_ref, w1, b1, w2, b2, w3, b3, out_ref, *,
                    chunk_b, vpu_first_layer, activation_dtype):
    """One batch tile of the decoder, processed in chunk_b-row sub-chunks."""
    tile_rows = out_ref.shape[0]
    n_chunks = tile_rows // chunk_b                     # static

    act_is_f32 = jnp.dtype(activation_dtype) == jnp.dtype(jnp.float32)

    def _tanh(pre):
        if act_is_f32:
            return jnp.tanh(pre)
        # v6e/v7x: bf16 EUP roughly doubles transcendental throughput; the
        # matmul inputs and accumulation stay f32.
        return jnp.tanh(pre.astype(activation_dtype)).astype(jnp.float32)

    # Params are VMEM-resident; load them once per grid step (loop-invariant).
    w1v, b1v = w1[...], b1[...]
    w2v, b2v = w2[...], b2[...]
    w3v, b3v = w3[...], b3[...]

    def chunk_body(c, carry):
        r0 = pl.multiple_of(c * chunk_b, chunk_b)
        x = x_ref[pl.ds(r0, chunk_b), :]

        # --- Layer 1: Linear(in_features, 64) + tanh ---
        if vpu_first_layer:
            # Tiny contraction dim: K broadcast FMAs on the VPU, skip the MXU.
            acc = x[:, 0:1] * w1v[0:1, :]
            for k in range(1, x.shape[1]):              # static unroll
                acc = acc + x[:, k:k + 1] * w1v[k:k + 1, :]
            pre1 = acc + b1v
        else:
            pre1 = jnp.dot(x, w1v, preferred_element_type=jnp.float32) + b1v
        h = _tanh(pre1)

        # --- Layer 2: Linear(64, 256) + relu (f32 MXU, f32 accumulate) ---
        h = jnp.maximum(
            jnp.dot(h, w2v, preferred_element_type=jnp.float32) + b2v, 0.0)

        # --- Layer 3: Linear(256, out_features) + tanh ---
        y = _tanh(jnp.dot(h, w3v, preferred_element_type=jnp.float32) + b3v)

        out_ref[pl.ds(r0, chunk_b), :] = y.astype(out_ref.dtype)
        return carry

    # fori_loop (not a Python for) so each chunk's vreg live ranges are bounded.
    lax.fori_loop(0, n_chunks, chunk_body, 0)


def decoder_forward(x, params, *, tile_b=512, chunk_b=128,
                    activation_dtype=jnp.float32, out_dtype=jnp.float32,
                    split_grid_for_two_cores=True):
    """Run the Decoder forward pass with a batch-gridded Pallas kernel."""
    w1, b1, w2, b2, w3, b3 = params
    bs, in_features = x.shape
    h1, h2 = w1.shape[1], w2.shape[1]
    out_features = w3.shape[1]

    # Minimal batch rounding: only to the sublane unit of the output dtype
    # (8 rows for f32, 16 for bf16).  No large pad / out-slice HBM round-trip.
    sub = max(8, 32 // jnp.dtype(out_dtype).itemsize)
    bs_pad = _round_up(bs, sub)
    if bs_pad != bs:
        x = jnp.pad(x, ((0, bs_pad - bs), (0, 0)))

    # chunk_b bounds vreg pressure inside the kernel; tile_b bounds the number
    # of grid steps.  Both are coerced to legal sublane multiples.
    chunk_b = max(sub, _round_up(min(chunk_b, tile_b, bs_pad), sub))
    tile_b = max(chunk_b, _round_up(min(tile_b, bs_pad), chunk_b))
    if split_grid_for_two_cores:
        # Keep >= 2 batch tiles when possible so the "parallel" axis can be
        # sharded across both v7x TensorCores (no effect on v5e/v6e).
        tile_b = min(tile_b, _round_up(pl.cdiv(bs_pad, 2), chunk_b))

    grid = (pl.cdiv(bs_pad, tile_b),)

    vpu_first_layer = in_features <= 8
    kernel = functools.partial(
        _decoder_kernel, chunk_b=chunk_b, vpu_first_layer=vpu_first_layer,
        activation_dtype=activation_dtype)

    def resident(arr):
        # Full-array block + constant index_map -> parameters stay
        # VMEM-resident across all grid steps (DMA'd once, no re-fetch).
        # (Optional micro-opt skipped for safety: pipeline_mode=pl.Buffered(1)
        #  would drop the redundant second buffer for these constant blocks.)
        return pl.BlockSpec(arr.shape, lambda i: (0, 0))

    out_itemsize = jnp.dtype(out_dtype).itemsize
    flops = 2 * bs_pad * (in_features * h1 + h1 * h2 + h2 * out_features)
    transcendentals = bs_pad * (h1 + out_features)        # tanh calls
    param_bytes = sum(int(a.size) * a.dtype.itemsize
                      for a in (w1, b1, w2, b2, w3, b3))
    bytes_accessed = (int(x.size) * x.dtype.itemsize
                      + bs_pad * out_features * out_itemsize
                      + param_bytes)

    out = pl.pallas_call(
        kernel,
        out_shape=jax.ShapeDtypeStruct((bs_pad, out_features), out_dtype),
        grid=grid,
        in_specs=[
            pl.BlockSpec((tile_b, in_features), lambda i: (i, 0)),
            resident(w1), resident(b1),
            resident(w2), resident(b2),
            resident(w3), resident(b3),
        ],
        out_specs=pl.BlockSpec((tile_b, out_features), lambda i: (i, 0)),
        compiler_params=pltpu.CompilerParams(
            dimension_semantics=("parallel",)),
        cost_estimate=pl.CostEstimate(
            flops=flops,
            transcendentals=transcendentals,
            bytes_accessed=bytes_accessed),
    )(x, w1, b1, w2, b2, w3, b3)

    return out[:bs] if bs_pad != bs else out


def init_decoder_params(key, in_features, out_features):
    """Deterministic PyTorch-style fan-in uniform init; W stored as (in, out)."""
    sizes = [(in_features, 64), (64, 256), (256, out_features)]
    params = []
    for fan_in, fan_out in sizes:
        key, kw, kb = jax.random.split(key, 3)
        bound = 1.0 / float(fan_in) ** 0.5
        w = jax.random.uniform(kw, (fan_in, fan_out), jnp.float32, -bound, bound)
        b = jax.random.uniform(kb, (1, fan_out), jnp.float32, -bound, bound)
        params += [w, b]
    return params


def decoder_reference(x, params):
    """Pure-JAX reference matching the PyTorch Decoder.forward."""
    w1, b1, w2, b2, w3, b3 = params
    h = jnp.tanh(x @ w1 + b1)
    h = jnp.maximum(h @ w2 + b2, 0.0)
    return jnp.tanh(h @ w3 + b3)


if __name__ == "__main__":
    in_features = 2        # latent dim fed into the Decoder
    out_features = 128     # lane-dense (multiple of 128) output width
    bs = 256

    key = jax.random.PRNGKey(0)
    key, kx = jax.random.split(key)
    x = jax.random.normal(kx, (bs, in_features), jnp.float32)
    params = init_decoder_params(key, in_features, out_features)

    ref = decoder_reference(x, params)

    # Default f32 path.  With bs=256 the wrapper picks tile_b=128 -> a 2-tile
    # parallel batch grid (both v7x TensorCores busy), no pad, no output slice.
    out = decoder_forward(x, params)
    out = jax.block_until_ready(out)
    assert out.shape == (bs, out_features)
    assert out.dtype == jnp.float32
    assert jnp.allclose(out, ref, atol=1e-5, rtol=1e-5)

    # bf16-tanh option (v6e/v7x EUP throughput); ~bf16 activation accuracy.
    out_bf = decoder_forward(x, params, activation_dtype=jnp.bfloat16)
    out_bf = jax.block_until_ready(out_bf)
    assert out_bf.shape == (bs, out_features)
    assert float(jnp.max(jnp.abs(out_bf - ref))) < 5e-2

    print("KERNEL_OK")
</pallas_src>

<mosaic_0001>
module attributes {stable_mosaic.version = 11 : i64} {
  func.func @_decoder_kernel(%arg0: i32, %arg1: memref<128x2xf32, #tpu.memory_space<vmem>>, %arg2: memref<2x64xf32, #tpu.memory_space<vmem>>, %arg3: memref<1x64xf32, #tpu.memory_space<vmem>>, %arg4: memref<64x256xf32, #tpu.memory_space<vmem>>, %arg5: memref<1x256xf32, #tpu.memory_space<vmem>>, %arg6: memref<256x128xf32, #tpu.memory_space<vmem>>, %arg7: memref<1x128xf32, #tpu.memory_space<vmem>>, %arg8: memref<128x128xf32, #tpu.memory_space<vmem>>) attributes {dimension_semantics = [#tpu.dimension_semantics<parallel>], iteration_bounds = array<i64: 2>, scalar_prefetch = 0 : i64, scratch_operands = 0 : i64, tpu.core_type = #tpu.core_type<tc>, window_params = [{transform_indices = @transform_0, window_bounds = array<i64: 128, 2>}, {pipeline_mode = #tpu.pipeline_mode<synchronous>, transform_indices = @transform_1, window_bounds = array<i64: 2, 64>}, {pipeline_mode = #tpu.pipeline_mode<synchronous>, transform_indices = @transform_2, window_bounds = array<i64: 1, 64>}, {pipeline_mode = #tpu.pipeline_mode<synchronous>, transform_indices = @transform_3, window_bounds = array<i64: 64, 256>}, {pipeline_mode = #tpu.pipeline_mode<synchronous>, transform_indices = @transform_4, window_bounds = array<i64: 1, 256>}, {pipeline_mode = #tpu.pipeline_mode<synchronous>, transform_indices = @transform_5, window_bounds = array<i64: 256, 128>}, {pipeline_mode = #tpu.pipeline_mode<synchronous>, transform_indices = @transform_6, window_bounds = array<i64: 1, 128>}, {transform_indices = @transform_7, window_bounds = array<i64: 128, 128>}]} {
    %c0 = arith.constant 0 : index
    %c0_0 = arith.constant 0 : index
    %0 = vector.load %arg2[%c0, %c0_0] : memref<2x64xf32, #tpu.memory_space<vmem>>, vector<2x64xf32>
    %c0_1 = arith.constant 0 : index
    %c0_2 = arith.constant 0 : index
    %1 = vector.load %arg3[%c0_1, %c0_2] : memref<1x64xf32, #tpu.memory_space<vmem>>, vector<1x64xf32>
    %c0_3 = arith.constant 0 : index
    %c0_4 = arith.constant 0 : index
    %2 = vector.load %arg4[%c0_3, %c0_4] : memref<64x256xf32, #tpu.memory_space<vmem>>, vector<64x256xf32>
    %c0_5 = arith.constant 0 : index
    %c0_6 = arith.constant 0 : index
    %3 = vector.load %arg5[%c0_5, %c0_6] : memref<1x256xf32, #tpu.memory_space<vmem>>, vector<1x256xf32>
    %c0_7 = arith.constant 0 : index
    %c0_8 = arith.constant 0 : index
    %4 = vector.load %arg6[%c0_7, %c0_8] : memref<256x128xf32, #tpu.memory_space<vmem>>, vector<256x128xf32>
    %c0_9 = arith.constant 0 : index
    %c0_10 = arith.constant 0 : index
    %5 = vector.load %arg7[%c0_9, %c0_10] : memref<1x128xf32, #tpu.memory_space<vmem>>, vector<1x128xf32>
    %c0_i32 = arith.constant 0 : i32
    %c128_i32 = arith.constant 128 : i32
    %6 = arith.muli %c0_i32, %c128_i32 : i32
    %7 = tpu.assume_multiple %6, 128 : i32
    %8 = arith.index_cast %7 : i32 to index
    %c0_11 = arith.constant 0 : index
    %9 = vector.load %arg1[%8, %c0_11] : memref<128x2xf32, #tpu.memory_space<vmem>>, vector<128x2xf32>
    %10 = vector.extract_strided_slice %9 {offsets = [0, 0], sizes = [128, 1], strides = [1, 1]} : vector<128x2xf32> to vector<128x1xf32>
    %11 = vector.extract_strided_slice %0 {offsets = [0, 0], sizes = [1, 64], strides = [1, 1]} : vector<2x64xf32> to vector<1x64xf32>
    %12 = vector.broadcast %10 : vector<128x1xf32> to vector<128x64xf32>
    %13 = vector.broadcast %11 : vector<1x64xf32> to vector<128x64xf32>
    %14 = arith.mulf %12, %13 : vector<128x64xf32>
    %15 = vector.extract_strided_slice %9 {offsets = [0, 1], sizes = [128, 1], strides = [1, 1]} : vector<128x2xf32> to vector<128x1xf32>
    %16 = vector.extract_strided_slice %0 {offsets = [1, 0], sizes = [1, 64], strides = [1, 1]} : vector<2x64xf32> to vector<1x64xf32>
    %17 = vector.broadcast %15 : vector<128x1xf32> to vector<128x64xf32>
    %18 = vector.broadcast %16 : vector<1x64xf32> to vector<128x64xf32>
    %19 = arith.mulf %17, %18 : vector<128x64xf32>
    %20 = arith.addf %14, %19 : vector<128x64xf32>
    %21 = vector.broadcast %1 : vector<1x64xf32> to vector<128x64xf32>
    %22 = arith.addf %20, %21 : vector<128x64xf32>
    %23 = math.tanh %22 : vector<128x64xf32>
    %cst = arith.constant dense<0.000000e+00> : vector<128x256xf32>
    %24 = tpu.matmul %23, %2, %cst {dimension_numbers = #tpu.dot_dimension_numbers<[1], [0], [0], [1], [0, 0, 1, 1], [], []>} : vector<128x64xf32>, vector<64x256xf32>, vector<128x256xf32> -> vector<128x256xf32>
    %25 = vector.broadcast %3 : vector<1x256xf32> to vector<128x256xf32>
    %26 = arith.addf %24, %25 : vector<128x256xf32>
    %cst_12 = arith.constant 0.000000e+00 : f32
    %27 = vector.broadcast %cst_12 : f32 to vector<128x256xf32>
    %28 = arith.maximumf %26, %27 : vector<128x256xf32>
    %cst_13 = arith.constant dense<0.000000e+00> : vector<128x128xf32>
    %29 = tpu.matmul %28, %4, %cst_13 {dimension_numbers = #tpu.dot_dimension_numbers<[1], [0], [0], [1], [0, 0, 1, 1], [], []>} : vector<128x256xf32>, vector<256x128xf32>, vector<128x128xf32> -> vector<128x128xf32>
    %30 = vector.broadcast %5 : vector<1x128xf32> to vector<128x128xf32>
    %31 = arith.addf %29, %30 : vector<128x128xf32>
    %32 = math.tanh %31 : vector<128x128xf32>
    %33 = arith.index_cast %7 : i32 to index
    %c0_14 = arith.constant 0 : index
    %34 = vector.load %arg8[%33, %c0_14] : memref<128x128xf32, #tpu.memory_space<vmem>>, vector<128x128xf32>
    tpu.vector_store %arg8[%33, %c0_14], %32 {strides = array<i32>} : memref<128x128xf32, #tpu.memory_space<vmem>>, vector<128x128xf32>,
    %c1_i32 = arith.constant 1 : i32
    return
  }
  func.func @transform_0(%arg0: i32) -> (i32, i32) {
    %c0_i32 = arith.constant 0 : i32
    %c0_i32_0 = arith.constant 0 : i32
    return %arg0, %c0_i32 : i32, i32
  }
  func.func @transform_1(%arg0: i32) -> (i32, i32) {
    %c0_i32 = arith.constant 0 : i32
    %c0_i32_0 = arith.constant 0 : i32
    %c0_i32_1 = arith.constant 0 : i32
    return %c0_i32, %c0_i32_0 : i32, i32
  }
  func.func @transform_2(%arg0: i32) -> (i32, i32) {
    %c0_i32 = arith.constant 0 : i32
    %c0_i32_0 = arith.constant 0 : i32
    %c0_i32_1 = arith.constant 0 : i32
    return %c0_i32, %c0_i32_0 : i32, i32
  }
  func.func @transform_3(%arg0: i32) -> (i32, i32) {
    %c0_i32 = arith.constant 0 : i32
    %c0_i32_0 = arith.constant 0 : i32
    %c0_i32_1 = arith.constant 0 : i32
    return %c0_i32, %c0_i32_0 : i32, i32
  }
  func.func @transform_4(%arg0: i32) -> (i32, i32) {
    %c0_i32 = arith.constant 0 : i32
    %c0_i32_0 = arith.constant 0 : i32
    %c0_i32_1 = arith.constant 0 : i32
    return %c0_i32, %c0_i32_0 : i32, i32
  }
  func.func @transform_5(%arg0: i32) -> (i32, i32) {
    %c0_i32 = arith.constant 0 : i32
    %c0_i32_0 = arith.constant 0 : i32
    %c0_i32_1 = arith.constant 0 : i32
    return %c0_i32, %c0_i32_0 : i32, i32
  }
  func.func @transform_6(%arg0: i32) -> (i32, i32) {
    %c0_i32 = arith.constant 0 : i32
    %c0_i32_0 = arith.constant 0 : i32
    %c0_i32_1 = arith.constant 0 : i32
    return %c0_i32, %c0_i32_0 : i32, i32
  }
  func.func @transform_7(%arg0: i32) -> (i32, i32) {
    %c0_i32 = arith.constant 0 : i32
    %c0_i32_0 = arith.constant 0 : i32
    return %arg0, %c0_i32 : i32, i32
  }
}

</mosaic_0001>

<llo_original>
// kernel: tpu_custom_call.1
$region0: #{tpu_custom_call.1}
  #allocation0 [shape = 'u32[]', space=smem, size = 0x4, offset = 0x4, fixed_abs, tag = 'smem constant byte address 0x4 - core index']
  #allocation1 [shape = 'u32[144,128]{1,0:T(1,128)}', space=vmem, size = 0x12000, scoped, tag = 'internal scratch']
  %s0 = inlined_call_operand.vmem [shape: f32[256,2], index: 0, kind: input, shape index: {}]
  %s1 = inlined_call_operand.vmem [shape: f32[2,64], index: 1, kind: input, shape index: {}]
  %s2 = inlined_call_operand.vmem [shape: f32[1,64], index: 2, kind: input, shape index: {}]
  %s3 = inlined_call_operand.hbm [shape: f32[64,256], index: 3, kind: input, shape index: {}]
  %s4 = inlined_call_operand.vmem [shape: f32[1,256], index: 4, kind: input, shape index: {}]
  %s5 = inlined_call_operand.vmem [shape: f32[256,128], index: 5, kind: input, shape index: {}]
  %s6 = inlined_call_operand.vmem [shape: f32[1,128], index: 6, kind: input, shape index: {}]
  %s7 = inlined_call_operand.hbm [shape: f32[256,128], index: 7, kind: output, shape index: {}]
  %s8 = sld [smem:[#allocation0]]
  $region65: #{tpu_custom_call.1} parent=0
    _
  %s10 = ssub.s32 1, %s8
  %s11 = scalar_select 0, %s10, %s8
  $region1: #{tpu_custom_call.1} parent=0
    #allocation2 [shape = 'u8[65536]{0}', space=vmem, size = 0x10000, scoped, tag = 'input window, operand 3, single buffered']
    #allocation3 [shape = 's32[2]{0}', space=sflag, size = 0x8, scoped, tag = 'scoped memory for tpu_custom_call.1']
    #allocation4 [shape = 's32[2]{0}', space=sflag, size = 0x8, scoped, tag = 'scoped memory for tpu_custom_call.1']
    #allocation5 [shape = 'u8[131072]{0}', space=vmem, size = 0x20000, scoped, tag = 'output window, operand 0']
    %12 = vsyncpa [#allocation3], 0
    %13 = vsyncpa [#allocation4], 0
    %s14 = scalar_lea.sflag [#allocation4], 1
    %15 = vsyncpa %s14, 0
    loop: start=0, step=1, limit=4
    $region2: #{tpu_custom_call.1} parent=1 // loop_pre_header
      _
    $region3: #{tpu_custom_call.1} parent=1 // loop_header
      %s17 = sphi 0, %s21
      %p18 = scmp.ge.s32.totalorder %s17, 4
      %s27 = sphi 0, %s29
      %s30 = sphi 0, %s27
      %s31 = sphi 0, %s30
      %s47 = sphi 0, %s31
      %s51 = sphi 0, %s51
      %s53 = sphi 0, %s51
      %s54 = sphi 0, %s53
      %s68 = sphi 0, %s54
      %s72 = sphi 0, %s72
      %s74 = sphi 0, %s72
      %s75 = sphi 0, %s74
      %s89 = sphi 0, %s75
      %s93 = sphi 0, %s93
      %s95 = sphi 0, %s93
      %s96 = sphi 0, %s95
      %s110 = sphi 0, %s96
      %s114 = sphi 0, %s114
      %s116 = sphi 0, %s114
      %s117 = sphi 0, %s116
      %s131 = sphi 0, %s117
      %s135 = sphi 0, %s135
      %s137 = sphi 0, %s135
      %s138 = sphi 0, %s137
      %s152 = sphi 0, %s138
      %s156 = sphi 0, %s156
      %s158 = sphi 0, %s156
      %s159 = sphi 0, %s158
      %s173 = sphi 0, %s159
      %s179 = sphi 0, %s181
      %s182 = sphi 0, %s179
      %s183 = sphi 0, %s182
      %s199 = sphi 0, %s183
    $region4: #{tpu_custom_call.1} parent=1 // loop_header_branch
      %20 = sbr.rel (%p18) target = $region8
    $region5: #{tpu_custom_call.1} parent=1 // loop_body
      %s22 = ssub.s32 %s17, 1
      %s23 = ssub.s32 %s17, 2
      %s24 = sadd.s32 %s17, 1
      %s25 = ssub.s32 %s17, %s24
      %p26 = scmp.eq.s32.totalorder %s25, 0
      %s28 = sadd.s32 %s27, 1
      %s29 = scalar_select %p26, %s27, %s28
      %p32 = pneg %p26
      %p33 = scmp.eq.s32.totalorder %s17, 1
      %p34 = por %p32, %p33
      %p35 = scmp.ne.s32.totalorder %s27, %s30
      %p36 = scmp.eq.s32.totalorder %s17, 0
      %p37 = por %p35, %p36
      %p38 = scmp.ne.s32.totalorder %s27, %s30
      %p39 = scmp.eq.s32.totalorder %s22, 1
      %p40 = por %p38, %p39
      %p41 = scmp.ne.s32.totalorder %s30, %s31
      %p42 = scmp.eq.s32.totalorder %s22, 0
      %p43 = por %p41, %p42
      %p44 = scmp.ne.s32.totalorder %s30, %s31
      %p45 = scmp.eq.s32.totalorder %s23, 1
      %p46 = por %p44, %p45
      %p48 = scmp.ne.s32.totalorder %s31, %s47
      %p49 = scmp.eq.s32.totalorder %s23, 0
      %p50 = por %p48, %p49
      %s52 = sadd.s32 %s51, 1
      %p55 = scmp.eq.s32.totalorder %s17, 1
      %p56 = scmp.ne.s32.totalorder %s51, %s53
      %p57 = scmp.eq.s32.totalorder %s17, 0
      %p58 = por %p56, %p57
      %p59 = scmp.ne.s32.totalorder %s51, %s53
      %p60 = scmp.eq.s32.totalorder %s22, 1
      %p61 = por %p59, %p60
      %p62 = scmp.ne.s32.totalorder %s53, %s54
      %p63 = scmp.eq.s32.totalorder %s22, 0
      %p64 = por %p62, %p63
      %p65 = scmp.ne.s32.totalorder %s53, %s54
      %p66 = scmp.eq.s32.totalorder %s23, 1
      %p67 = por %p65, %p66
      %p69 = scmp.ne.s32.totalorder %s54, %s68
      %p70 = scmp.eq.s32.totalorder %s23, 0
      %p71 = por %p69, %p70
      %s73 = sadd.s32 %s72, 1
      %p76 = scmp.eq.s32.totalorder %s17, 1
      %p77 = scmp.ne.s32.totalorder %s72, %s74
      %p78 = scmp.eq.s32.totalorder %s17, 0
      %p79 = por %p77, %p78
      %p80 = scmp.ne.s32.totalorder %s72, %s74
      %p81 = scmp.eq.s32.totalorder %s22, 1
      %p82 = por %p80, %p81
      %p83 = scmp.ne.s32.totalorder %s74, %s75
      %p84 = scmp.eq.s32.totalorder %s22, 0
      %p85 = por %p83, %p84
      %p86 = scmp.ne.s32.totalorder %s74, %s75
      %p87 = scmp.eq.s32.totalorder %s23, 1
      %p88 = por %p86, %p87
      %p90 = scmp.ne.s32.totalorder %s75, %s89
      %p91 = scmp.eq.s32.totalorder %s23, 0
      %p92 = por %p90, %p91
      %s94 = sadd.s32 %s93, 1
      %p97 = scmp.eq.s32.totalorder %s17, 1
      %p98 = scmp.ne.s32.totalorder %s93, %s95
      %p99 = scmp.eq.s32.totalorder %s17, 0
      %p100 = por %p98, %p99
      %p101 = scmp.ne.s32.totalorder %s93, %s95
      %p102 = scmp.eq.s32.totalorder %s22, 1
      %p103 = por %p101, %p102
      %p104 = scmp.ne.s32.totalorder %s95, %s96
      %p105 = scmp.eq.s32.totalorder %s22, 0
      %p106 = por %p104, %p105
      %p107 = scmp.ne.s32.totalorder %s95, %s96
      %p108 = scmp.eq.s32.totalorder %s23, 1
      %p109 = por %p107, %p108
      %p111 = scmp.ne.s32.totalorder %s96, %s110
      %p112 = scmp.eq.s32.totalorder %s23, 0
      %p113 = por %p111, %p112
      %s115 = sadd.s32 %s114, 1
      %p118 = scmp.eq.s32.totalorder %s17, 1
      %p119 = scmp.ne.s32.totalorder %s114, %s116
      %p120 = scmp.eq.s32.totalorder %s17, 0
      %p121 = por %p119, %p120
      %p122 = scmp.ne.s32.totalorder %s114, %s116
      %p123 = scmp.eq.s32.totalorder %s22, 1
      %p124 = por %p122, %p123
      %p125 = scmp.ne.s32.totalorder %s116, %s117
      %p126 = scmp.eq.s32.totalorder %s22, 0
      %p127 = por %p125, %p126
      %p128 = scmp.ne.s32.totalorder %s116, %s117
      %p129 = scmp.eq.s32.totalorder %s23, 1
      %p130 = por %p128, %p129
      %p132 = scmp.ne.s32.totalorder %s117, %s131
      %p133 = scmp.eq.s32.totalorder %s23, 0
      %p134 = por %p132, %p133
      %s136 = sadd.s32 %s135, 1
      %p139 = scmp.eq.s32.totalorder %s17, 1
      %p140 = scmp.ne.s32.totalorder %s135, %s137
      %p141 = scmp.eq.s32.totalorder %s17, 0
      %p142 = por %p140, %p141
      %p143 = scmp.ne.s32.totalorder %s135, %s137
      %p144 = scmp.eq.s32.totalorder %s22, 1
      %p145 = por %p143, %p144
      %p146 = scmp.ne.s32.totalorder %s137, %s138
      %p147 = scmp.eq.s32.totalorder %s22, 0
      %p148 = por %p146, %p147
      %p149 = scmp.ne.s32.totalorder %s137, %s138
      %p150 = scmp.eq.s32.totalorder %s23, 1
      %p151 = por %p149, %p150
      %p153 = scmp.ne.s32.totalorder %s138, %s152
      %p154 = scmp.eq.s32.totalorder %s23, 0
      %p155 = por %p153, %p154
      %s157 = sadd.s32 %s156, 1
      %p160 = scmp.eq.s32.totalorder %s17, 1
      %p161 = scmp.ne.s32.totalorder %s156, %s158
      %p162 = scmp.eq.s32.totalorder %s17, 0
      %p163 = por %p161, %p162
      %p164 = scmp.ne.s32.totalorder %s156, %s158
      %p165 = scmp.eq.s32.totalorder %s22, 1
      %p166 = por %p164, %p165
      %p167 = scmp.ne.s32.totalorder %s158, %s159
      %p168 = scmp.eq.s32.totalorder %s22, 0
      %p169 = por %p167, %p168
      %p170 = scmp.ne.s32.totalorder %s158, %s159
      %p171 = scmp.eq.s32.totalorder %s23, 1
      %p172 = por %p170, %p171
      %p174 = scmp.ne.s32.totalorder %s159, %s173
      %p175 = scmp.eq.s32.totalorder %s23, 0
      %p176 = por %p174, %p175
      %s177 = ssub.s32 %s17, %s24
      %p178 = scmp.eq.s32.totalorder %s177, 0
      %s180 = sadd.s32 %s179, 1
      %s181 = scalar_select %p178, %s179, %s180
      %p184 = pneg %p178
      %p185 = scmp.eq.s32.totalorder %s17, 1
      %p186 = por %p184, %p185
      %p187 = scmp.ne.s32.totalorder %s179, %s182
      %p188 = scmp.eq.s32.totalorder %s17, 0
      %p189 = por %p187, %p188
      %p190 = scmp.ne.s32.totalorder %s179, %s182
      %p191 = scmp.eq.s32.totalorder %s22, 1
      %p192 = por %p190, %p191
      %p193 = scmp.ne.s32.totalorder %s182, %s183
      %p194 = scmp.eq.s32.totalorder %s22, 0
      %p195 = por %p193, %p194
      %p196 = scmp.ne.s32.totalorder %s182, %s183
      %p197 = scmp.eq.s32.totalorder %s23, 1
      %p198 = por %p196, %p197
      %p200 = scmp.ne.s32.totalorder %s183, %s199
      %p201 = scmp.eq.s32.totalorder %s23, 0
      %p202 = por %p200, %p201
      %p203 = scmp.le.s32.totalorder 1, %s17
      %p204 = scmp.lt.s32.totalorder %s17, 3
      %p205 = pnand %p203, %p204
      %p206 = pneg %p205
      // Predicated region
      $region9: #{tpu_custom_call.1} parent=5 // pred_check
        _
      $region10: #{tpu_custom_call.1} parent=5 // pred_check_branch
        %208 = sbr.rel (%p205) target = $region12
      $region11: #{tpu_custom_call.1} parent=5 // pred_region
        %s209 = ssub.s32 %s17, 1
        // Predicated region
        $region13: #{tpu_custom_call.1} parent=11 // pred_check
          %p210 = pneg %p64
        $region14: #{tpu_custom_call.1} parent=11 // pred_check_branch
          %212 = sbr.rel (%p210) target = $region16
        $region15: #{tpu_custom_call.1} parent=11 // pred_region
          _
        $region16: #{tpu_custom_call.1} parent=11 // pred_fallthru
          _
        // Predicated region
        $region17: #{tpu_custom_call.1} parent=11 // pred_check
          %p213 = pneg %p85
        $region18: #{tpu_custom_call.1} parent=11 // pred_check_branch
          %215 = sbr.rel (%p213) target = $region20
        $region19: #{tpu_custom_call.1} parent=11 // pred_region
          _
        $region20: #{tpu_custom_call.1} parent=11 // pred_fallthru
          _
        // Predicated region
        $region21: #{tpu_custom_call.1} parent=11 // pred_check
          %p216 = pneg %p106
        $region22: #{tpu_custom_call.1} parent=11 // pred_check_branch
          %218 = sbr.rel (%p216) target = $region24
        $region23: #{tpu_custom_call.1} parent=11 // pred_region
          %s220 = ssub.s32 2048, 2048
          %221 = vsyncadd [#allocation3], %s220
          %s222 = sshll.u32 [#allocation2], 4
          %s223 = int_to_ptr.vmem [resolvable:$true] %s222
          %228 = dma.hbm_to_vmem [thread:$0]  %s3, 2048, %s223, [#allocation3], 256, 256, 16
        $region24: #{tpu_custom_call.1} parent=11 // pred_fallthru
          _
        // Predicated region
        $region25: #{tpu_custom_call.1} parent=11 // pred_check
          %p229 = pneg %p127
        $region26: #{tpu_custom_call.1} parent=11 // pred_check_branch
          %231 = sbr.rel (%p229) target = $region28
        $region27: #{tpu_custom_call.1} parent=11 // pred_region
          _
        $region28: #{tpu_custom_call.1} parent=11 // pred_fallthru
          _
        // Predicated region
        $region29: #{tpu_custom_call.1} parent=11 // pred_check
          %p232 = pneg %p148
        $region30: #{tpu_custom_call.1} parent=11 // pred_check_branch
          %234 = sbr.rel (%p232) target = $region32
        $region31: #{tpu_custom_call.1} parent=11 // pred_region
          _
        $region32: #{tpu_custom_call.1} parent=11 // pred_fallthru
          _
        // Predicated region
        $region33: #{tpu_custom_call.1} parent=11 // pred_check
          %p235 = pneg %p169
        $region34: #{tpu_custom_call.1} parent=11 // pred_check_branch
          %237 = sbr.rel (%p235) target = $region36
        $region35: #{tpu_custom_call.1} parent=11 // pred_region
          _
        $region36: #{tpu_custom_call.1} parent=11 // pred_fallthru
          _
      $region12: #{tpu_custom_call.1} parent=5 // pred_fallthru
        _
      %p238 = scmp.lt.s32.totalorder %s17, 2
      // Predicated region
      $region37: #{tpu_custom_call.1} parent=5 // pred_check
        %p239 = pneg %p238
      $region38: #{tpu_custom_call.1} parent=5 // pred_check_branch
        %241 = sbr.rel (%p239) target = $region40
      $region39: #{tpu_custom_call.1} parent=5 // pred_region
        // Predicated region
        $region41: #{tpu_custom_call.1} parent=39 // pred_check
          %p242 = pneg %p37
        $region42: #{tpu_custom_call.1} parent=39 // pred_check_branch
          %244 = sbr.rel (%p242) target = $region44
        $region43: #{tpu_custom_call.1} parent=39 // pred_region
          %s245 = smul.u32 16, %s17
          %p246 = scmp.lt.s32.totalorder %s245, 31
          %s247 = scalar_select %p246, %s245, 31
          %s248 = smul.addr %s247, 8
          %s249 = scalar_lea.vmem %s0, %s248
          %s250 = smul.u32 16, %s17
        $region44: #{tpu_custom_call.1} parent=39 // pred_fallthru
          _
      $region40: #{tpu_custom_call.1} parent=5 // pred_fallthru
        _
      %p251 = scmp.le.s32.totalorder 1, %s17
      %p252 = scmp.lt.s32.totalorder %s17, 3
      %p253 = pnand %p251, %p252
      %p254 = pneg %p253
      // Predicated region
      $region45: #{tpu_custom_call.1} parent=5 // pred_check
        _
      $region46: #{tpu_custom_call.1} parent=5 // pred_check_branch
        %256 = sbr.rel (%p253) target = $region48
      $region47: #{tpu_custom_call.1} parent=5 // pred_region
        %s257 = ssub.s32 %s17, 1
        // Predicated region
        $region49: #{tpu_custom_call.1} parent=47 // pred_check
          %p258 = pneg %p106
        $region50: #{tpu_custom_call.1} parent=47 // pred_check_branch
          %260 = sbr.rel (%p258) target = $region52
        $region51: #{tpu_custom_call.1} parent=47 // pred_region
          %261 = dma.done [#allocation3], 2048
        $region52: #{tpu_custom_call.1} parent=47 // pred_fallthru
          _
        %s262 = smul.u32 16, %s22
        %p263 = scmp.lt.s32.totalorder %s262, 31
        %s264 = scalar_select %p263, %s262, 31
        %s265 = smul.addr %s264, 8
        %s266 = scalar_lea.vmem %s0, %s265
        %p267 = pneg %p43
        %p268 = pneg %p40
        %p269 = pneg %p64
        %p270 = pneg %p61
        %p271 = pneg %p85
        %p272 = pneg %p82
        %p273 = pneg %p106
        %p274 = pneg %p103
        %p275 = pneg %p127
        %p276 = pneg %p124
        %p277 = pneg %p148
        %p278 = pneg %p145
        %p279 = pneg %p169
        %p280 = pneg %p166
        %p281 = pneg %p195
        %p282 = pneg %p192
        %s283 = sand.u32 %s182, 1
        %s284 = scalar_lea.sflag [#allocation4], %s283
        %s285 = sand.u32 %s182, 1
        %s286 = smul.addr %s285, 128
        %s287 = scalar_lea.vmem [#allocation5], %s286
        %s288 = smul.u32 16, %s22
        %p289 = scmp.lt.s32.totalorder %s288, 31
        %s290 = scalar_select %p289, %s288, 31
        %s291 = smul.addr %s290, 8
        %s292 = scalar_lea.vmem %s0, %s291
        %s293 = smul.u32 16, %s22
        %s294 = smul.u32 16, %s22
        %v295 = vld [vmem:[%s1] sm:$0x3]
        %v296 = vld [vmem:[%s2] sm:$0x1]
        %v297 = vld [vmem:[#allocation2] sm:$0xff]
        %v298 = vld [vmem:[#allocation2 + $0x8] sm:$0xff]
        %v299 = vld [vmem:[#allocation2 + $0x10] sm:$0xff]
        %v300 = vld [vmem:[#allocation2 + $0x18] sm:$0xff]
        %v301 = vld [vmem:[#allocation2 + $0x20] sm:$0xff]
        %v302 = vld [vmem:[#allocation2 + $0x28] sm:$0xff]
        %v303 = vld [vmem:[#allocation2 + $0x30] sm:$0xff]
        %v304 = vld [vmem:[#allocation2 + $0x38] sm:$0xff]
        %v305 = vld [vmem:[#allocation2 + $0x40] sm:$0xff]
        %v306 = vld [vmem:[#allocation2 + $0x48] sm:$0xff]
        %v307 = vld [vmem:[#allocation2 + $0x50] sm:$0xff]
        %v308 = vld [vmem:[#allocation2 + $0x58] sm:$0xff]
        %v309 = vld [vmem:[#allocation2 + $0x60] sm:$0xff]
        %v310 = vld [vmem:[#allocation2 + $0x68] sm:$0xff]
        %v311 = vld [vmem:[#allocation2 + $0x70] sm:$0xff]
        %v312 = vld [vmem:[#allocation2 + $0x78] sm:$0xff]
        %v313 = vld [vmem:[%s4] sm:$0x3]
        %v314 = vld [vmem:[%s5] sm:$0xff]
        %v315 = vld [vmem:[%s5 + $0x8] sm:$0xff]
        %v316 = vld [vmem:[%s5 + $0x10] sm:$0xff]
        %v317 = vld [vmem:[%s5 + $0x18] sm:$0xff]
        %v318 = vld [vmem:[%s5 + $0x20] sm:$0xff]
        %v319 = vld [vmem:[%s5 + $0x28] sm:$0xff]
        %v320 = vld [vmem:[%s5 + $0x30] sm:$0xff]
        %v321 = vld [vmem:[%s5 + $0x38] sm:$0xff]
        %v322 = vld [vmem:[%s5 + $0x40] sm:$0xff]
        %v323 = vld [vmem:[%s5 + $0x48] sm:$0xff]
        %v324 = vld [vmem:[%s5 + $0x50] sm:$0xff]
        %v325 = vld [vmem:[%s5 + $0x58] sm:$0xff]
        %v326 = vld [vmem:[%s5 + $0x60] sm:$0xff]
        %v327 = vld [vmem:[%s5 + $0x68] sm:$0xff]
        %v328 = vld [vmem:[%s5 + $0x70] sm:$0xff]
        %v329 = vld [vmem:[%s5 + $0x78] sm:$0xff]
        %v330 = vld [vmem:[%s5 + $0x80] sm:$0xff]
        %v331 = vld [vmem:[%s5 + $0x88] sm:$0xff]
        %v332 = vld [vmem:[%s5 + $0x90] sm:$0xff]
        %v333 = vld [vmem:[%s5 + $0x98] sm:$0xff]
        %v334 = vld [vmem:[%s5 + $0xa0] sm:$0xff]
        %v335 = vld [vmem:[%s5 + $0xa8] sm:$0xff]
        %v336 = vld [vmem:[%s5 + $0xb0] sm:$0xff]
        %v337 = vld [vmem:[%s5 + $0xb8] sm:$0xff]
        %v338 = vld [vmem:[%s5 + $0xc0] sm:$0xff]
        %v339 = vld [vmem:[%s5 + $0xc8] sm:$0xff]
        %v340 = vld [vmem:[%s5 + $0xd0] sm:$0xff]
        %v341 = vld [vmem:[%s5 + $0xd8] sm:$0xff]
        %v342 = vld [vmem:[%s5 + $0xe0] sm:$0xff]
        %v343 = vld [vmem:[%s5 + $0xe8] sm:$0xff]
        %v344 = vld [vmem:[%s5 + $0xf0] sm:$0xff]
        %v345 = vld [vmem:[%s5 + $0xf8] sm:$0xff]
        %v346 = vld [vmem:[%s6] sm:$0x1]
        %v347 = vld [vmem:[%s292] sm:$0xff]
        %v348 = vld [vmem:[%s292 + $0x8] sm:$0xff]
        %v349 = vld [vmem:[%s292 + $0x10] sm:$0xff]
        %v350 = vld [vmem:[%s292 + $0x18] sm:$0xff]
        %v351 = vld [vmem:[%s292 + $0x20] sm:$0xff]
        %v352 = vld [vmem:[%s292 + $0x28] sm:$0xff]
        %v353 = vld [vmem:[%s292 + $0x30] sm:$0xff]
        %v354 = vld [vmem:[%s292 + $0x38] sm:$0xff]
        %v355 = vld [vmem:[%s292 + $0x40] sm:$0xff]
        %v356 = vld [vmem:[%s292 + $0x48] sm:$0xff]
        %v357 = vld [vmem:[%s292 + $0x50] sm:$0xff]
        %v358 = vld [vmem:[%s292 + $0x58] sm:$0xff]
        %v359 = vld [vmem:[%s292 + $0x60] sm:$0xff]
        %v360 = vld [vmem:[%s292 + $0x68] sm:$0xff]
        %v361 = vld [vmem:[%s292 + $0x70] sm:$0xff]
        %v362 = vld [vmem:[%s292 + $0x78] sm:$0xff]
        %364 = vset.pattern.permute.xlu0 0
        %365 = vperm.xlu0 %364, %v347
        %v366 = vpop.permute.xlu0 %365
        %369 = vset.pattern.permute.xlu0 0
        %370 = vperm.xlu0 %369, %v348
        %v371 = vpop.permute.xlu0 %370
        %374 = vset.pattern.permute.xlu0 0
        %375 = vperm.xlu0 %374, %v349
        %v376 = vpop.permute.xlu0 %375
        %379 = vset.pattern.permute.xlu0 0
        %380 = vperm.xlu0 %379, %v350
        %v381 = vpop.permute.xlu0 %380
        %384 = vset.pattern.permute.xlu0 0
        %385 = vperm.xlu0 %384, %v351
        %v386 = vpop.permute.xlu0 %385
        %389 = vset.pattern.permute.xlu0 0
        %390 = vperm.xlu0 %389, %v352
        %v391 = vpop.permute.xlu0 %390
        %394 = vset.pattern.permute.xlu0 0
        %395 = vperm.xlu0 %394, %v353
        %v396 = vpop.permute.xlu0 %395
        %399 = vset.pattern.permute.xlu0 0
        %400 = vperm.xlu0 %399, %v354
        %v401 = vpop.permute.xlu0 %400
        %404 = vset.pattern.permute.xlu0 0
        %405 = vperm.xlu0 %404, %v355
        %v406 = vpop.permute.xlu0 %405
        %409 = vset.pattern.permute.xlu0 0
        %410 = vperm.xlu0 %409, %v356
        %v411 = vpop.permute.xlu0 %410
        %414 = vset.pattern.permute.xlu0 0
        %415 = vperm.xlu0 %414, %v357
        %v416 = vpop.permute.xlu0 %415
        %419 = vset.pattern.permute.xlu0 0
        %420 = vperm.xlu0 %419, %v358
        %v421 = vpop.permute.xlu0 %420
        %424 = vset.pattern.permute.xlu0 0
        %425 = vperm.xlu0 %424, %v359
        %v426 = vpop.permute.xlu0 %425
        %429 = vset.pattern.permute.xlu0 0
        %430 = vperm.xlu0 %429, %v360
        %v431 = vpop.permute.xlu0 %430
        %434 = vset.pattern.permute.xlu0 0
        %435 = vperm.xlu0 %434, %v361
        %v436 = vpop.permute.xlu0 %435
        %439 = vset.pattern.permute.xlu0 0
        %440 = vperm.xlu0 %439, %v362
        %v441 = vpop.permute.xlu0 %440
        %v443 = vlaneseq
        %v444 = vshrl.u32 %v443, 7
        %v445 = vsub.s32 0, %v444
        %v446 = vrot.slane %v295, %v445
        %v447 = vmul.f32 %v366, %v446
        %v448 = vmul.f32 %v371, %v446
        %v449 = vmul.f32 %v376, %v446
        %v450 = vmul.f32 %v381, %v446
        %v451 = vmul.f32 %v386, %v446
        %v452 = vmul.f32 %v391, %v446
        %v453 = vmul.f32 %v396, %v446
        %v454 = vmul.f32 %v401, %v446
        %v455 = vmul.f32 %v406, %v446
        %v456 = vmul.f32 %v411, %v446
        %v457 = vmul.f32 %v416, %v446
        %v458 = vmul.f32 %v421, %v446
        %v459 = vmul.f32 %v426, %v446
        %v460 = vmul.f32 %v431, %v446
        %v461 = vmul.f32 %v436, %v446
        %v462 = vmul.f32 %v441, %v446
        %463 = vset.pattern.permute.xlu0 1
        %464 = vperm.xlu0 %463, %v347
        %v465 = vpop.permute.xlu0 %464
        %467 = vset.pattern.permute.xlu0 1
        %468 = vperm.xlu0 %467, %v348
        %v469 = vpop.permute.xlu0 %468
        %471 = vset.pattern.permute.xlu0 1
        %472 = vperm.xlu0 %471, %v349
        %v473 = vpop.permute.xlu0 %472
        %475 = vset.pattern.permute.xlu0 1
        %476 = vperm.xlu0 %475, %v350
        %v477 = vpop.permute.xlu0 %476
        %479 = vset.pattern.permute.xlu0 1
        %480 = vperm.xlu0 %479, %v351
        %v481 = vpop.permute.xlu0 %480
        %483 = vset.pattern.permute.xlu0 1
        %484 = vperm.xlu0 %483, %v352
        %v485 = vpop.permute.xlu0 %484
        %487 = vset.pattern.permute.xlu0 1
        %488 = vperm.xlu0 %487, %v353
        %v489 = vpop.permute.xlu0 %488
        %491 = vset.pattern.permute.xlu0 1
        %492 = vperm.xlu0 %491, %v354
        %v493 = vpop.permute.xlu0 %492
        %495 = vset.pattern.permute.xlu0 1
        %496 = vperm.xlu0 %495, %v355
        %v497 = vpop.permute.xlu0 %496
        %499 = vset.pattern.permute.xlu0 1
        %500 = vperm.xlu0 %499, %v356
        %v501 = vpop.permute.xlu0 %500
        %503 = vset.pattern.permute.xlu0 1
        %504 = vperm.xlu0 %503, %v357
        %v505 = vpop.permute.xlu0 %504
        %507 = vset.pattern.permute.xlu0 1
        %508 = vperm.xlu0 %507, %v358
        %v509 = vpop.permute.xlu0 %508
        %511 = vset.pattern.permute.xlu0 1
        %512 = vperm.xlu0 %511, %v359
        %v513 = vpop.permute.xlu0 %512
        %515 = vset.pattern.permute.xlu0 1
        %516 = vperm.xlu0 %515, %v360
        %v517 = vpop.permute.xlu0 %516
        %519 = vset.pattern.permute.xlu0 1
        %520 = vperm.xlu0 %519, %v361
        %v521 = vpop.permute.xlu0 %520
        %523 = vset.pattern.permute.xlu0 1
        %524 = vperm.xlu0 %523, %v362
        %v525 = vpop.permute.xlu0 %524
        %v527 = vlaneseq
        %v528 = vshrl.u32 %v527, 7
        %v529 = vsub.s32 1, %v528
        %v530 = vrot.slane %v295, %v529
        %v531 = vmul.f32 %v465, %v530
        %v532 = vmul.f32 %v469, %v530
        %v533 = vmul.f32 %v473, %v530
        %v534 = vmul.f32 %v477, %v530
        %v535 = vmul.f32 %v481, %v530
        %v536 = vmul.f32 %v485, %v530
        %v537 = vmul.f32 %v489, %v530
        %v538 = vmul.f32 %v493, %v530
        %v539 = vmul.f32 %v497, %v530
        %v540 = vmul.f32 %v501, %v530
        %v541 = vmul.f32 %v505, %v530
        %v542 = vmul.f32 %v509, %v530
        %v543 = vmul.f32 %v513, %v530
        %v544 = vmul.f32 %v517, %v530
        %v545 = vmul.f32 %v521, %v530
        %v546 = vmul.f32 %v525, %v530
        %v547 = vadd.f32 %v447, %v531
        %v548 = vadd.f32 %v448, %v532
        %v549 = vadd.f32 %v449, %v533
        %v550 = vadd.f32 %v450, %v534
        %v551 = vadd.f32 %v451, %v535
        %v552 = vadd.f32 %v452, %v536
        %v553 = vadd.f32 %v453, %v537
        %v554 = vadd.f32 %v454, %v538
        %v555 = vadd.f32 %v455, %v539
        %v556 = vadd.f32 %v456, %v540
        %v557 = vadd.f32 %v457, %v541
        %v558 = vadd.f32 %v458, %v542
        %v559 = vadd.f32 %v459, %v543
        %v560 = vadd.f32 %v460, %v544
        %v561 = vadd.f32 %v461, %v545
        %v562 = vadd.f32 %v462, %v546
        %v564 = vlaneseq
        %v565 = vshrl.u32 %v564, 7
        %v566 = vsub.s32 0, %v565
        %v567 = vrot.slane %v296, %v566
        %v569 = vadd.f32 %v547, %v567
        %v570 = vadd.f32 %v548, %v567
        %v571 = vadd.f32 %v549, %v567
        %v572 = vadd.f32 %v550, %v567
        %v573 = vadd.f32 %v551, %v567
        %v574 = vadd.f32 %v552, %v567
        %v575 = vadd.f32 %v553, %v567
        %v576 = vadd.f32 %v554, %v567
        %v577 = vadd.f32 %v555, %v567
        %v578 = vadd.f32 %v556, %v567
        %v579 = vadd.f32 %v557, %v567
        %v580 = vadd.f32 %v558, %v567
        %v581 = vadd.f32 %v559, %v567
        %v582 = vadd.f32 %v560, %v567
        %v583 = vadd.f32 %v561, %v567
        %v584 = vadd.f32 %v562, %v567
        %v585 = vtanh.pop %v569
        %v586 = vtanh.pop %v570
        %v587 = vtanh.pop %v571
        %v588 = vtanh.pop %v572
        %v589 = vtanh.pop %v573
        %v590 = vtanh.pop %v574
        %v591 = vtanh.pop %v575
        %v592 = vtanh.pop %v576
        %v593 = vtanh.pop %v577
        %v594 = vtanh.pop %v578
        %v595 = vtanh.pop %v579
        %v596 = vtanh.pop %v580
        %v597 = vtanh.pop %v581
        %v598 = vtanh.pop %v582
        %v599 = vtanh.pop %v583
        %v600 = vtanh.pop %v584
        %v602 = vlaneseq
        %v603 = vshrl.u32 %v602, 7
        %v604 = vsub.s32 0, %v603
        %v605 = vrot.slane %v313, %v604
        %v606 = vlaneseq
        %v607 = vshrl.u32 %v606, 7
        %v608 = vsub.s32 1, %v607
        %v609 = vrot.slane %v313, %v608
        %vm612 = vcmask 523264
        %v614 = vsel %vm612, %v585, 0
        %v617 = vsel %vm612, %v586, 0
        %v620 = vsel %vm612, %v587, 0
        %v623 = vsel %vm612, %v588, 0
        %v626 = vsel %vm612, %v589, 0
        %v629 = vsel %vm612, %v590, 0
        %v632 = vsel %vm612, %v591, 0
        %v635 = vsel %vm612, %v592, 0
        %v638 = vsel %vm612, %v593, 0
        %v641 = vsel %vm612, %v594, 0
        %v644 = vsel %vm612, %v595, 0
        %v647 = vsel %vm612, %v596, 0
        %v650 = vsel %vm612, %v597, 0
        %v653 = vsel %vm612, %v598, 0
        %v656 = vsel %vm612, %v599, 0
        %v659 = vsel %vm612, %v600, 0
        %661 = vmatprep.subr.mxu0 %v298
        %662 = vmatpush1.msra.mxu0 %v297
        %663 = vmatprep.subr.mxu0 %v300
        %664 = vmatpush1.msra.mxu0 %v299
        %665 = vmatprep.subr.mxu0 %v302
        %666 = vmatpush1.msra.mxu0 %v301
        %667 = vmatprep.subr.mxu0 %v304
        %668 = vmatpush1.msra.mxu0 %v303
        %669 = vmatprep.subr.mxu0 %v306
        %670 = vmatpush1.msra.mxu0 %v305
        %671 = vmatprep.subr.mxu0 %v308
        %672 = vmatpush1.msra.mxu0 %v307
        %673 = vmatprep.subr.mxu0 %v310
        %674 = vmatpush1.msra.mxu0 %v309
        %675 = vmatprep.subr.mxu0 %v312
        %676 = vmatpush1.msra.mxu0 %v311
        %677 = vmatprep.subr.mxu0 0.0
        %678 = vmatpush1.msra.mxu0 0.0
        %679 = vmatprep.subr.mxu0 0.0
        %680 = vmatpush1.msra.mxu0 0.0
        %681 = vmatprep.subr.mxu0 0.0
        %682 = vmatpush1.msra.mxu0 0.0
        %683 = vmatprep.subr.mxu0 0.0
        %684 = vmatpush1.msra.mxu0 0.0
        %685 = vmatprep.subr.mxu0 0.0
        %686 = vmatpush1.msra.mxu0 0.0
        %687 = vmatprep.subr.mxu0 0.0
        %688 = vmatpush1.msra.mxu0 0.0
        %689 = vmatprep.subr.mxu0 0.0
        %690 = vmatpush1.msra.mxu0 0.0
        %691 = vmatprep.subr.mxu0 0.0
        %692 = vmatpush1.msra.mxu0 0.0
        %693 = vmatprep.subr.mxu0 0.0
        %694 = vmatpush1.msra.mxu0 0.0
        %695 = vmatprep.subr.mxu0 0.0
        %696 = vmatpush1.msra.mxu0 0.0
        %697 = vmatprep.subr.mxu0 0.0
        %698 = vmatpush1.msra.mxu0 0.0
        %699 = vmatprep.subr.mxu0 0.0
        %700 = vmatpush1.msra.mxu0 0.0
        %701 = vmatprep.subr.mxu0 0.0
        %702 = vmatpush1.msra.mxu0 0.0
        %703 = vmatprep.subr.mxu0 0.0
        %704 = vmatpush1.msra.mxu0 0.0
        %705 = vmatprep.subr.mxu0 0.0
        %706 = vmatpush1.msra.mxu0 0.0
        %707 = vmatprep.subr.mxu0 0.0
        %708 = vmatpush1.msra.mxu0 0.0
        %709 = vmatprep.subr.mxu0 0.0
        %710 = vmatpush1.msra.mxu0 0.0
        %711 = vmatprep.subr.mxu0 0.0
        %712 = vmatpush1.msra.mxu0 0.0
        %713 = vmatprep.subr.mxu0 0.0
        %714 = vmatpush1.msra.mxu0 0.0
        %715 = vmatprep.subr.mxu0 0.0
        %716 = vmatpush1.msra.mxu0 0.0
        %717 = vmatprep.subr.mxu0 0.0
        %718 = vmatpush1.msra.mxu0 0.0
        %719 = vmatprep.subr.mxu0 0.0
        %720 = vmatpush1.msra.mxu0 0.0
        %721 = vmatprep.subr.mxu0 0.0
        %722 = vmatpush1.msra.mxu0 0.0
        %723 = vmatprep.subr.mxu0 0.0
        %724 = vmatpush1.msra.mxu0 0.0
        %725 = vmatprep.mubr.f32.mxu0 0.0
        %726 = vmatmul.mubr.f32.gmra.mrb[0].mxu0 %v614
        %v727 = vpop.f32.mrb[0].mxu0
        %v728 = vadd.f32 %v605, %v727
        %v729 = vpop.f32.mrb[0].mxu0
        %v730 = vadd.f32 %v609, %v729
        %731 = vmatprep.mubr.f32.mxu0 0.0
        %732 = vmatmul.mubr.f32.gmra.mrb[0].mxu0 %v617
        %v733 = vpop.f32.mrb[0].mxu0
        %v734 = vadd.f32 %v605, %v733
        %v735 = vpop.f32.mrb[0].mxu0
        %v736 = vadd.f32 %v609, %v735
        %737 = vmatprep.mubr.f32.mxu0 0.0
        %738 = vmatmul.mubr.f32.gmra.mrb[0].mxu0 %v620
        %v739 = vpop.f32.mrb[0].mxu0
        %v740 = vadd.f32 %v605, %v739
        %v741 = vpop.f32.mrb[0].mxu0
        %v742 = vadd.f32 %v609, %v741
        %743 = vmatprep.mubr.f32.mxu0 0.0
        %744 = vmatmul.mubr.f32.gmra.mrb[0].mxu0 %v623
        %v745 = vpop.f32.mrb[0].mxu0
        %v746 = vadd.f32 %v605, %v745
        %v747 = vpop.f32.mrb[0].mxu0
        %v748 = vadd.f32 %v609, %v747
        %749 = vmatprep.mubr.f32.mxu0 0.0
        %750 = vmatmul.mubr.f32.gmra.mrb[0].mxu0 %v626
        %v751 = vpop.f32.mrb[0].mxu0
        %v752 = vadd.f32 %v605, %v751
        %v753 = vpop.f32.mrb[0].mxu0
        %v754 = vadd.f32 %v609, %v753
        %755 = vmatprep.mubr.f32.mxu0 0.0
        %756 = vmatmul.mubr.f32.gmra.mrb[0].mxu0 %v629
        %v757 = vpop.f32.mrb[0].mxu0
        %v758 = vadd.f32 %v605, %v757
        %v759 = vpop.f32.mrb[0].mxu0
        %v760 = vadd.f32 %v609, %v759
        %761 = vmatprep.mubr.f32.mxu0 0.0
        %762 = vmatmul.mubr.f32.gmra.mrb[0].mxu0 %v632
        %v763 = vpop.f32.mrb[0].mxu0
        %v764 = vadd.f32 %v605, %v763
        %v765 = vpop.f32.mrb[0].mxu0
        %v766 = vadd.f32 %v609, %v765
        %767 = vmatprep.mubr.f32.mxu0 0.0
        %768 = vmatmul.mubr.f32.gmra.mrb[0].mxu0 %v635
        %v769 = vpop.f32.mrb[0].mxu0
        %v770 = vadd.f32 %v605, %v769
        %v771 = vpop.f32.mrb[0].mxu0
        %v772 = vadd.f32 %v609, %v771
        %773 = vmatprep.mubr.f32.mxu0 0.0
        %774 = vmatmul.mubr.f32.gmra.mrb[0].mxu0 %v638
        %v775 = vpop.f32.mrb[0].mxu0
        %v776 = vadd.f32 %v605, %v775
        %v777 = vpop.f32.mrb[0].mxu0
        %v778 = vadd.f32 %v609, %v777
        %779 = vmatprep.mubr.f32.mxu0 0.0
        %780 = vmatmul.mubr.f32.gmra.mrb[0].mxu0 %v641
        %v781 = vpop.f32.mrb[0].mxu0
        %v782 = vadd.f32 %v605, %v781
        %v783 = vpop.f32.mrb[0].mxu0
        %v784 = vadd.f32 %v609, %v783
        %785 = vmatprep.mubr.f32.mxu0 0.0
        %786 = vmatmul.mubr.f32.gmra.mrb[0].mxu0 %v644
        %v787 = vpop.f32.mrb[0].mxu0
        %v788 = vadd.f32 %v605, %v787
        %v789 = vpop.f32.mrb[0].mxu0
        %v790 = vadd.f32 %v609, %v789
        %791 = vmatprep.mubr.f32.mxu0 0.0
        %792 = vmatmul.mubr.f32.gmra.mrb[0].mxu0 %v647
        %v793 = vpop.f32.mrb[0].mxu0
        %v794 = vadd.f32 %v605, %v793
        %v795 = vpop.f32.mrb[0].mxu0
        %v796 = vadd.f32 %v609, %v795
        %797 = vmatprep.mubr.f32.mxu0 0.0
        %798 = vmatmul.mubr.f32.gmra.mrb[0].mxu0 %v650
        %v799 = vpop.f32.mrb[0].mxu0
        %v800 = vadd.f32 %v605, %v799
        %v801 = vpop.f32.mrb[0].mxu0
        %v802 = vadd.f32 %v609, %v801
        %803 = vmatprep.mubr.f32.mxu0 0.0
        %804 = vmatmul.mubr.f32.gmra.mrb[0].mxu0 %v653
        %v805 = vpop.f32.mrb[0].mxu0
        %v806 = vadd.f32 %v605, %v805
        %v807 = vpop.f32.mrb[0].mxu0
        %v808 = vadd.f32 %v609, %v807
        %809 = vmatprep.mubr.f32.mxu0 0.0
        %810 = vmatmul.mubr.f32.gmra.mrb[0].mxu0 %v656
        %v811 = vpop.f32.mrb[0].mxu0
        %v812 = vadd.f32 %v605, %v811
        %v813 = vpop.f32.mrb[0].mxu0
        %v814 = vadd.f32 %v609, %v813
        %815 = vmatprep.mubr.f32.mxu0 0.0
        %816 = vmatmul.mubr.f32.gmra.mrb[0].mxu0 %v659
        %v817 = vpop.f32.mrb[0].mxu0
        %v818 = vadd.f32 %v605, %v817
        %v819 = vpop.f32.mrb[0].mxu0
        %v820 = vadd.f32 %v609, %v819
        %821 = vdwg.mxu0
        %v822 = vmax.f32 %v728, 0.0
        %v823 = vmax.f32 %v730, 0.0
        %v824 = vmax.f32 %v734, 0.0
        %v825 = vmax.f32 %v736, 0.0
        %v826 = vmax.f32 %v740, 0.0
        %v827 = vmax.f32 %v742, 0.0
        %v828 = vmax.f32 %v746, 0.0
        %v829 = vmax.f32 %v748, 0.0
        %v830 = vmax.f32 %v752, 0.0
        %v831 = vmax.f32 %v754, 0.0
        %v832 = vmax.f32 %v758, 0.0
        %v833 = vmax.f32 %v760, 0.0
        %v834 = vmax.f32 %v764, 0.0
        %v835 = vmax.f32 %v766, 0.0
        %v836 = vmax.f32 %v770, 0.0
        %v837 = vmax.f32 %v772, 0.0
        %v838 = vmax.f32 %v776, 0.0
        %v839 = vmax.f32 %v778, 0.0
        %v840 = vmax.f32 %v782, 0.0
        %v841 = vmax.f32 %v784, 0.0
        %v842 = vmax.f32 %v788, 0.0
        %v843 = vmax.f32 %v790, 0.0
        %v844 = vmax.f32 %v794, 0.0
        %v845 = vmax.f32 %v796, 0.0
        %v846 = vmax.f32 %v800, 0.0
        %v847 = vmax.f32 %v802, 0.0
        %v848 = vmax.f32 %v806, 0.0
        %v849 = vmax.f32 %v808, 0.0
        %v850 = vmax.f32 %v812, 0.0
        %v851 = vmax.f32 %v814, 0.0
        %v852 = vmax.f32 %v818, 0.0
        %v853 = vmax.f32 %v820, 0.0
        %v855 = vlaneseq
        %v856 = vshrl.u32 %v855, 7
        %v857 = vsub.s32 0, %v856
        %v858 = vrot.slane %v346, %v857
        %860 = vmatprep.subr.mxu0 0.0
        %861 = vmatpush1.msra.mxu0 %v314
        %862 = vmatprep.subr.mxu0 0.0
        %863 = vmatpush1.msra.mxu0 %v315
        %864 = vmatprep.subr.mxu0 0.0
        %865 = vmatpush1.msra.mxu0 %v316
        %866 = vmatprep.subr.mxu0 0.0
        %867 = vmatpush1.msra.mxu0 %v317
        %868 = vmatprep.subr.mxu0 0.0
        %869 = vmatpush1.msra.mxu0 %v318
        %870 = vmatprep.subr.mxu0 0.0
        %871 = vmatpush1.msra.mxu0 %v319
        %872 = vmatprep.subr.mxu0 0.0
        %873 = vmatpush1.msra.mxu0 %v320
        %874 = vmatprep.subr.mxu0 0.0
        %875 = vmatpush1.msra.mxu0 %v321
        %876 = vmatprep.subr.mxu0 0.0
        %877 = vmatpush1.msra.mxu0 %v322
        %878 = vmatprep.subr.mxu0 0.0
        %879 = vmatpush1.msra.mxu0 %v323
        %880 = vmatprep.subr.mxu0 0.0
        %881 = vmatpush1.msra.mxu0 %v324
        %882 = vmatprep.subr.mxu0 0.0
        %883 = vmatpush1.msra.mxu0 %v325
        %884 = vmatprep.subr.mxu0 0.0
        %885 = vmatpush1.msra.mxu0 %v326
        %886 = vmatprep.subr.mxu0 0.0
        %887 = vmatpush1.msra.mxu0 %v327
        %888 = vmatprep.subr.mxu0 0.0
        %889 = vmatpush1.msra.mxu0 %v328
        %890 = vmatprep.subr.mxu0 0.0
        %891 = vmatpush1.msra.mxu0 %v329
        %892 = vmatprep.subr.mxu0 0.0
        %893 = vmatpush1.msra.mxu0 %v330
        %894 = vmatprep.subr.mxu0 0.0
        %895 = vmatpush1.msra.mxu0 %v331
        %896 = vmatprep.subr.mxu0 0.0
        %897 = vmatpush1.msra.mxu0 %v332
        %898 = vmatprep.subr.mxu0 0.0
        %899 = vmatpush1.msra.mxu0 %v333
        %900 = vmatprep.subr.mxu0 0.0
        %901 = vmatpush1.msra.mxu0 %v334
        %902 = vmatprep.subr.mxu0 0.0
        %903 = vmatpush1.msra.mxu0 %v335
        %904 = vmatprep.subr.mxu0 0.0
        %905 = vmatpush1.msra.mxu0 %v336
        %906 = vmatprep.subr.mxu0 0.0
        %907 = vmatpush1.msra.mxu0 %v337
        %908 = vmatprep.subr.mxu0 0.0
        %909 = vmatpush1.msra.mxu0 %v338
        %910 = vmatprep.subr.mxu0 0.0
        %911 = vmatpush1.msra.mxu0 %v339
        %912 = vmatprep.subr.mxu0 0.0
        %913 = vmatpush1.msra.mxu0 %v340
        %914 = vmatprep.subr.mxu0 0.0
        %915 = vmatpush1.msra.mxu0 %v341
        %916 = vmatprep.subr.mxu0 0.0
        %917 = vmatpush1.msra.mxu0 %v342
        %918 = vmatprep.subr.mxu0 0.0
        %919 = vmatpush1.msra.mxu0 %v343
        %920 = vmatprep.subr.mxu0 0.0
        %921 = vmatpush1.msra.mxu0 %v344
        %922 = vmatprep.subr.mxu0 0.0
        %923 = vmatpush1.msra.mxu0 %v345
        %924 = vmatprep.mubr.f32.mxu0 %v823
        %925 = vmatmul.mubr.f32.gmra.mrb[0].mxu0 %v822
        %v926 = vpop.f32.mrb[0].mxu0
        %v927 = vadd.f32 %v858, %v926
        %v928 = vpop.f32.mrb[0].mxu0
        %929 = vmatprep.mubr.f32.mxu0 %v825
        %930 = vmatmul.mubr.f32.gmra.mrb[0].mxu0 %v824
        %v931 = vpop.f32.mrb[0].mxu0
        %v932 = vadd.f32 %v858, %v931
        %v933 = vpop.f32.mrb[0].mxu0
        %934 = vmatprep.mubr.f32.mxu0 %v827
        %935 = vmatmul.mubr.f32.gmra.mrb[0].mxu0 %v826
        %v936 = vpop.f32.mrb[0].mxu0
        %v937 = vadd.f32 %v858, %v936
        %v938 = vpop.f32.mrb[0].mxu0
        %939 = vmatprep.mubr.f32.mxu0 %v829
        %940 = vmatmul.mubr.f32.gmra.mrb[0].mxu0 %v828
        %v941 = vpop.f32.mrb[0].mxu0
        %v942 = vadd.f32 %v858, %v941
        %v943 = vpop.f32.mrb[0].mxu0
        %944 = vmatprep.mubr.f32.mxu0 %v831
        %945 = vmatmul.mubr.f32.gmra.mrb[0].mxu0 %v830
        %v946 = vpop.f32.mrb[0].mxu0
        %v947 = vadd.f32 %v858, %v946
        %v948 = vpop.f32.mrb[0].mxu0
        %949 = vmatprep.mubr.f32.mxu0 %v833
        %950 = vmatmul.mubr.f32.gmra.mrb[0].mxu0 %v832
        %v951 = vpop.f32.mrb[0].mxu0
        %v952 = vadd.f32 %v858, %v951
        %v953 = vpop.f32.mrb[0].mxu0
        %954 = vmatprep.mubr.f32.mxu0 %v835
        %955 = vmatmul.mubr.f32.gmra.mrb[0].mxu0 %v834
        %v956 = vpop.f32.mrb[0].mxu0
        %v957 = vadd.f32 %v858, %v956
        %v958 = vpop.f32.mrb[0].mxu0
        %959 = vmatprep.mubr.f32.mxu0 %v837
        %960 = vmatmul.mubr.f32.gmra.mrb[0].mxu0 %v836
        %v961 = vpop.f32.mrb[0].mxu0
        %v962 = vadd.f32 %v858, %v961
        %v963 = vpop.f32.mrb[0].mxu0
        %964 = vmatprep.mubr.f32.mxu0 %v839
        %965 = vmatmul.mubr.f32.gmra.mrb[0].mxu0 %v838
        %v966 = vpop.f32.mrb[0].mxu0
        %v967 = vadd.f32 %v858, %v966
        %v968 = vpop.f32.mrb[0].mxu0
        %969 = vmatprep.mubr.f32.mxu0 %v841
        %970 = vmatmul.mubr.f32.gmra.mrb[0].mxu0 %v840
        %v971 = vpop.f32.mrb[0].mxu0
        %v972 = vadd.f32 %v858, %v971
        %v973 = vpop.f32.mrb[0].mxu0
        %974 = vmatprep.mubr.f32.mxu0 %v843
        %975 = vmatmul.mubr.f32.gmra.mrb[0].mxu0 %v842
        %v976 = vpop.f32.mrb[0].mxu0
        %v977 = vadd.f32 %v858, %v976
        %v978 = vpop.f32.mrb[0].mxu0
        %979 = vmatprep.mubr.f32.mxu0 %v845
        %980 = vmatmul.mubr.f32.gmra.mrb[0].mxu0 %v844
        %v981 = vpop.f32.mrb[0].mxu0
        %v982 = vadd.f32 %v858, %v981
        %v983 = vpop.f32.mrb[0].mxu0
        %984 = vmatprep.mubr.f32.mxu0 %v847
        %985 = vmatmul.mubr.f32.gmra.mrb[0].mxu0 %v846
        %v986 = vpop.f32.mrb[0].mxu0
        %v987 = vadd.f32 %v858, %v986
        %v988 = vpop.f32.mrb[0].mxu0
        %989 = vmatprep.mubr.f32.mxu0 %v849
        %990 = vmatmul.mubr.f32.gmra.mrb[0].mxu0 %v848
        %v991 = vpop.f32.mrb[0].mxu0
        %v992 = vadd.f32 %v858, %v991
        %v993 = vpop.f32.mrb[0].mxu0
        %994 = vmatprep.mubr.f32.mxu0 %v851
        %995 = vmatmul.mubr.f32.gmra.mrb[0].mxu0 %v850
        %v996 = vpop.f32.mrb[0].mxu0
        %v997 = vadd.f32 %v858, %v996
        %v998 = vpop.f32.mrb[0].mxu0
        %999 = vmatprep.mubr.f32.mxu0 %v853
        %1000 = vmatmul.mubr.f32.gmra.mrb[0].mxu0 %v852
        %v1001 = vpop.f32.mrb[0].mxu0
        %v1002 = vadd.f32 %v858, %v1001
        %v1003 = vpop.f32.mrb[0].mxu0
        %1004 = vdwg.mxu0
        %v1005 = vtanh.pop %v927
        %v1006 = vtanh.pop %v932
        %v1007 = vtanh.pop %v937
        %v1008 = vtanh.pop %v942
        %v1009 = vtanh.pop %v947
        %v1010 = vtanh.pop %v952
        %v1011 = vtanh.pop %v957
        %v1012 = vtanh.pop %v962
        %v1013 = vtanh.pop %v967
        %v1014 = vtanh.pop %v972
        %v1015 = vtanh.pop %v977
        %v1016 = vtanh.pop %v982
        %v1017 = vtanh.pop %v987
        %v1018 = vtanh.pop %v992
        %v1019 = vtanh.pop %v997
        %v1020 = vtanh.pop %v1002
        %1021 = vst [vmem:[%s287] sm:$0xff] %v1005
        %1022 = vst [vmem:[%s287 + $0x8] sm:$0xff] %v1006
        %1023 = vst [vmem:[%s287 + $0x10] sm:$0xff] %v1007
        %1024 = vst [vmem:[%s287 + $0x18] sm:$0xff] %v1008
        %1025 = vst [vmem:[%s287 + $0x20] sm:$0xff] %v1009
        %1026 = vst [vmem:[%s287 + $0x28] sm:$0xff] %v1010
        %1027 = vst [vmem:[%s287 + $0x30] sm:$0xff] %v1011
        %1028 = vst [vmem:[%s287 + $0x38] sm:$0xff] %v1012
        %1029 = vst [vmem:[%s287 + $0x40] sm:$0xff] %v1013
        %1030 = vst [vmem:[%s287 + $0x48] sm:$0xff] %v1014
        %1031 = vst [vmem:[%s287 + $0x50] sm:$0xff] %v1015
        %1032 = vst [vmem:[%s287 + $0x58] sm:$0xff] %v1016
        %1033 = vst [vmem:[%s287 + $0x60] sm:$0xff] %v1017
        %1034 = vst [vmem:[%s287 + $0x68] sm:$0xff] %v1018
        %1035 = vst [vmem:[%s287 + $0x70] sm:$0xff] %v1019
        %1036 = vst [vmem:[%s287 + $0x78] sm:$0xff] %v1020
        %s1037 = sand.u32 %s182, 1
        %s1038 = scalar_lea.sflag [#allocation4], %s1037
        %s1039 = sand.u32 %s182, 1
        %s1040 = smul.addr %s1039, 128
        %s1041 = scalar_lea.vmem [#allocation5], %s1040
        // Predicated region
        $region53: #{tpu_custom_call.1} parent=47 // pred_check
          %p1042 = pneg %p192
        $region54: #{tpu_custom_call.1} parent=47 // pred_check_branch
          %1044 = sbr.rel (%p1042) target = $region56
        $region55: #{tpu_custom_call.1} parent=47 // pred_region
          %s1045 = smul.u32 16, %s22
          %s1047 = ssub.s32 2048, 2048
          %1048 = vsyncadd %s1038, %s1047
          %s1049 = smul.addr %s1045, 128
          %s1050 = scalar_lea.hbm %s7, %s1049
          %s1051 = sshll.u32 %s1041, 4
          %s1052 = int_to_ptr.vmem [resolvable:$true] %s1051
          %1057 = dma.vmem_to_hbm [thread:$0]  %s1052, 2048, %s1050, %s1038, 128, 128, 8
        $region56: #{tpu_custom_call.1} parent=47 // pred_fallthru
          _
      $region48: #{tpu_custom_call.1} parent=5 // pred_fallthru
        _
      %p1058 = scmp.le.s32.totalorder 2, %s17
      // Predicated region
      $region57: #{tpu_custom_call.1} parent=5 // pred_check
        %p1059 = pneg %p1058
      $region58: #{tpu_custom_call.1} parent=5 // pred_check_branch
        %1061 = sbr.rel (%p1059) target = $region60
      $region59: #{tpu_custom_call.1} parent=5 // pred_region
        %s1062 = ssub.s32 %s17, 2
        // Predicated region
        $region61: #{tpu_custom_call.1} parent=59 // pred_check
          %p1063 = pneg %p198
        $region62: #{tpu_custom_call.1} parent=59 // pred_check_branch
          %1065 = sbr.rel (%p1063) target = $region64
        $region63: #{tpu_custom_call.1} parent=59 // pred_region
          %s1066 = sand.u32 %s183, 1
          %s1067 = scalar_lea.sflag [#allocation4], %s1066
          %s1068 = sand.u32 %s183, 1
          %s1069 = smul.addr %s1068, 128
          %s1070 = scalar_lea.vmem [#allocation5], %s1069
          %1071 = dma.done %s1067, 2048
        $region64: #{tpu_custom_call.1} parent=59 // pred_fallthru
          _
      $region60: #{tpu_custom_call.1} parent=5 // pred_fallthru
        _
    $region6: #{tpu_custom_call.1} parent=1 // loop_footer
      %s21 = sadd.s32 1, %s17
    $region7: #{tpu_custom_call.1} parent=1 // loop_footer_branch
      %16 = sbr.rel target = $region3
    $region8: #{tpu_custom_call.1} parent=1 // loop_exit
      _
    %1072 = vsyncpa [#allocation3], 1
    %s1073 = scalar_lea.sflag [#allocation3], 1
    %1074 = vsyncpa %s1073, 1
    %1075 = vsyncpa [#allocation4], 1
    %s1076 = scalar_lea.sflag [#allocation4], 1
    %1077 = vsyncpa %s1076, 1

</llo_original>
